<compile_context>
chip_gen: v5e
topology: v5e:2x2
jax: 0.10.0
libtpu: 0.0.40
codegen_flags: <defaults>
</compile_context>

<pallas_src>
import functools

import jax
import jax.numpy as jnp
from jax import lax
from jax.experimental import pallas as pl
from jax.experimental.pallas import tpu as pltpu


# ---------------------------------------------------------------------------
# Kernels
# ---------------------------------------------------------------------------

def _revin_norm_kernel(eps, affine,
                       x_ref, w_ref, b_ref,
                       y_ref, mean_ref, std_ref):
    """Per-instance stats over time + fused affine, one batch tile."""
    # Upcast inside the kernel: f32 accumulation even for bf16 inputs.
    x = x_ref[...].astype(jnp.float32)                    # (Bt, T, C)
    mean = jnp.mean(x, axis=1, keepdims=True)              # (Bt, 1, C)
    xc = x - mean
    var = jnp.mean(xc * xc, axis=1, keepdims=True)         # unbiased=False
    stdev = jnp.sqrt(var + eps)                            # stored statistic
    inv_std = lax.rsqrt(var + eps)                         # EUP slot, off VALU path
    if affine:                                             # trace-time branch
        scale = inv_std * w_ref[...].astype(jnp.float32)   # (Bt,1,C)
        shift = b_ref[...].astype(jnp.float32) - mean * scale
    else:
        scale = inv_std
        shift = -(mean * scale)
    # Hot loop: one FMA per element, lane-broadcast scale/shift.
    y_ref[...] = (x * scale + shift).astype(y_ref.dtype)
    mean_ref[...] = mean.astype(mean_ref.dtype)
    std_ref[...] = stdev.astype(std_ref.dtype)


def _revin_denorm_kernel(eps, affine,
                         x_ref, w_ref, b_ref, mean_ref, std_ref,
                         y_ref):
    """Inverse transform using stored statistics, one batch tile."""
    x = x_ref[...].astype(jnp.float32)                     # (Bt, T, C)
    mean = mean_ref[...]                                   # (Bt, 1, C) f32
    std = std_ref[...]                                     # (Bt, 1, C) f32
    if affine:
        # One exact divide per channel, then broadcast multiplies (T*C divides
        # -> C divides + T*C FMAs).
        inv_w = 1.0 / (w_ref[...].astype(jnp.float32) + eps * eps)
        scale = std * inv_w
        shift = mean - b_ref[...].astype(jnp.float32) * scale
    else:
        scale = std
        shift = mean
    y_ref[...] = (x * scale + shift).astype(y_ref.dtype)


# ---------------------------------------------------------------------------
# Tiling / spec helpers
# ---------------------------------------------------------------------------

def _auto_batch_tile(B, T, C, itemsize, batch_tile):
    """Pick a batch tile: ~2 MiB x-blocks, >=2 grid steps, divisor of B."""
    if batch_tile is not None:
        bt = max(1, min(int(batch_tile), B))
    else:
        row_bytes = max(1, T * C * itemsize)
        bt = max(1, (2 * 1024 * 1024) // row_bytes)         # ~2 MiB per x tile
        bt = min(bt, B)
        # Deepen the pipeline toward >= 8 steps, but keep tiles >= ~512 KiB.
        while bt > 1 and (B // bt) < 8 and bt * row_bytes > (512 * 1024):
            bt //= 2
        # Never collapse to a single grid step when B > 1: a 2nd step enables
        # software pipelining and lets the "parallel" axis split across TCs.
        if bt >= B and B > 1:
            bt = B // 2
    bt = max(1, bt)
    while B % bt != 0:                                       # exact tiling only
        bt -= 1
    return bt


def _specs(B, T, C, Bt):
    grid = (B // Bt,)
    x_spec = pl.BlockSpec((Bt, T, C), lambda i: (i, 0, 0))
    stat_spec = pl.BlockSpec((Bt, 1, C), lambda i: (i, 0, 0))
    # Weights/bias are grid-invariant (constant index_map): tiny, DMA'd once.
    wb_spec = pl.BlockSpec((1, 1, C), lambda i: (0, 0, 0))
    return grid, x_spec, stat_spec, wb_spec


def _compiler_params(Bt, T, C, itemsize):
    tile_bytes = Bt * T * C * itemsize
    # Double-buffered in + out plus whole-tile f32 intermediates ~= 8-10x the
    # tile bytes.  32 MiB floor lifts v5e's 16 MiB scoped default; 48 MiB cap
    # stays inside v7x's 64 MiB physical VMEM.
    vmem_limit = int(min(48 * 1024 * 1024,
                         max(32 * 1024 * 1024, 10 * tile_bytes)))
    return pltpu.CompilerParams(
        dimension_semantics=("parallel",),
        vmem_limit_bytes=vmem_limit,
    )


def _affine_params(weight, bias, C, affine):
    if affine and weight is not None:
        w3 = jnp.asarray(weight, jnp.float32).reshape(1, 1, C)
    else:
        w3 = jnp.ones((1, 1, C), jnp.float32)
    if affine and bias is not None:
        b3 = jnp.asarray(bias, jnp.float32).reshape(1, 1, C)
    else:
        b3 = jnp.zeros((1, 1, C), jnp.float32)
    return w3, b3


# ---------------------------------------------------------------------------
# Wrappers
# ---------------------------------------------------------------------------

def revin_norm(x, weight=None, bias=None, *, eps=1e-5, affine=True,
               batch_tile=None):
    """RevIN mode='norm'. Returns (y, mean, stdev)."""
    B, T, C = x.shape
    itemsize = x.dtype.itemsize
    Bt = _auto_batch_tile(B, T, C, itemsize, batch_tile)
    grid, x_spec, stat_spec, wb_spec = _specs(B, T, C, Bt)
    w3, b3 = _affine_params(weight, bias, C, affine)
    kernel = functools.partial(_revin_norm_kernel, float(eps), bool(affine))

    y, mean, stdev = pl.pallas_call(
        kernel,
        out_shape=(
            jax.ShapeDtypeStruct((B, T, C), x.dtype),
            jax.ShapeDtypeStruct((B, 1, C), jnp.float32),
            jax.ShapeDtypeStruct((B, 1, C), jnp.float32),
        ),
        grid_spec=pltpu.PrefetchScalarGridSpec(
            num_scalar_prefetch=0,
            grid=grid,
            in_specs=[x_spec, wb_spec, wb_spec],
            out_specs=[x_spec, stat_spec, stat_spec],
        ),
        compiler_params=_compiler_params(Bt, T, C, itemsize),
    )(x, w3, b3)
    return y, mean, stdev


def revin_denorm(x, weight=None, bias=None, mean=None, stdev=None, *,
                 eps=1e-5, affine=True, batch_tile=None):
    """RevIN mode='denorm'. Returns the de-normalized series."""
    B, T, C = x.shape
    itemsize = x.dtype.itemsize
    Bt = _auto_batch_tile(B, T, C, itemsize, batch_tile)
    grid, x_spec, stat_spec, wb_spec = _specs(B, T, C, Bt)
    w3, b3 = _affine_params(weight, bias, C, affine)
    mean = jnp.asarray(mean, jnp.float32).reshape(B, 1, C)
    stdev = jnp.asarray(stdev, jnp.float32).reshape(B, 1, C)
    kernel = functools.partial(_revin_denorm_kernel, float(eps), bool(affine))

    y = pl.pallas_call(
        kernel,
        out_shape=jax.ShapeDtypeStruct((B, T, C), x.dtype),
        grid_spec=pltpu.PrefetchScalarGridSpec(
            num_scalar_prefetch=0,
            grid=grid,
            in_specs=[x_spec, wb_spec, wb_spec, stat_spec, stat_spec],
            out_specs=x_spec,
        ),
        compiler_params=_compiler_params(Bt, T, C, itemsize),
    )(x, w3, b3, mean, stdev)
    return y


def revin_forward(x, mode, weight=None, bias=None, state=None, *,
                  eps=1e-5, affine=True, batch_tile=None):
    """Functional equivalent of RevIN.forward(x, mode).

    'norm'   -> returns (y, state) where state = (mean, stdev)
    'denorm' -> requires state from a prior 'norm' call, returns (y, state)
    """
    if mode == "norm":
        y, mean, stdev = revin_norm(x, weight, bias, eps=eps, affine=affine,
                                    batch_tile=batch_tile)
        return y, (mean, stdev)
    elif mode == "denorm":
        if state is None:
            raise ValueError("denorm requires statistics from a prior norm call")
        mean, stdev = state
        y = revin_denorm(x, weight, bias, mean, stdev, eps=eps, affine=affine,
                         batch_tile=batch_tile)
        return y, state
    else:
        raise NotImplementedError(mode)


# ---------------------------------------------------------------------------
# Pure-JAX reference (mirrors the PyTorch module exactly)
# ---------------------------------------------------------------------------

def _ref_norm(x, w, b, eps, affine):
    mean = jnp.mean(x, axis=1, keepdims=True)
    stdev = jnp.sqrt(jnp.var(x, axis=1, keepdims=True) + eps)  # ddof=0
    y = (x - mean) / stdev
    if affine:
        y = y * w.reshape(1, 1, -1) + b.reshape(1, 1, -1)
    return y, mean, stdev


def _ref_denorm(x, w, b, mean, stdev, eps, affine):
    if affine:
        x = (x - b.reshape(1, 1, -1)) / (w.reshape(1, 1, -1) + eps * eps)
    return x * stdev + mean


# ---------------------------------------------------------------------------
# Self-test
# ---------------------------------------------------------------------------

if __name__ == "__main__":
    B, T, C = 2, 16, 8          # batch, sequence length, num_features
    eps = 1e-5

    root = jax.random.PRNGKey(0)
    k_x, k_w, k_b = jax.random.split(root, 3)
    x = jax.random.normal(k_x, (B, T, C), jnp.float32) * 2.0 + 0.5
    # PyTorch init is ones/zeros; perturb so the affine path is exercised.
    weight = 1.0 + 0.1 * jax.random.normal(k_w, (C,), jnp.float32)
    bias = 0.05 * jax.random.normal(k_b, (C,), jnp.float32)

    # ---- f32, affine=True: norm ----
    y, (mean, stdev) = revin_forward(x, "norm", weight, bias,
                                     eps=eps, affine=True)
    jax.block_until_ready((y, mean, stdev))
    ref_y, ref_mean, ref_std = _ref_norm(x, weight, bias, eps, True)
    assert y.shape == (B, T, C)
    assert mean.shape == (B, 1, C) and stdev.shape == (B, 1, C)
    assert jnp.allclose(y, ref_y, atol=1e-5, rtol=1e-5)
    assert jnp.allclose(mean, ref_mean, atol=1e-5, rtol=1e-5)
    assert jnp.allclose(stdev, ref_std, atol=1e-5, rtol=1e-5)

    # ---- f32, affine=True: denorm (round trip through stored statistics) ----
    x_rt, _ = revin_forward(y, "denorm", weight, bias, state=(mean, stdev),
                            eps=eps, affine=True)
    jax.block_until_ready(x_rt)
    ref_rt = _ref_denorm(ref_y, weight, bias, ref_mean, ref_std, eps, True)
    assert jnp.allclose(x_rt, ref_rt, atol=1e-5, rtol=1e-5)
    assert jnp.allclose(x_rt, x, atol=1e-3, rtol=1e-3)

    # ---- f32, affine=False path ----
    y0, (m0, s0) = revin_forward(x, "norm", eps=eps, affine=False)
    jax.block_until_ready(y0)
    ref_y0, ref_m0, ref_s0 = _ref_norm(x, None, None, eps, False)
    assert jnp.allclose(y0, ref_y0, atol=1e-5, rtol=1e-5)
    assert jnp.allclose(m0, ref_m0, atol=1e-5, rtol=1e-5)
    assert jnp.allclose(s0, ref_s0, atol=1e-5, rtol=1e-5)

    # ---- bf16 I/O with f32 in-kernel accumulation ----
    xb = x.astype(jnp.bfloat16)
    yb, (mb, sb) = revin_forward(xb, "norm", weight, bias,
                                 eps=eps, affine=True)
    jax.block_until_ready(yb)
    ref_yb, _, _ = _ref_norm(xb.astype(jnp.float32), weight, bias, eps, True)
    assert yb.dtype == jnp.bfloat16
    assert mb.dtype == jnp.float32 and sb.dtype == jnp.float32
    assert jnp.allclose(yb.astype(jnp.float32), ref_yb, atol=5e-2, rtol=5e-2)

    print("KERNEL_OK")
</pallas_src>

<mosaic_0001>
module attributes {stable_mosaic.version = 11 : i64} {
  func.func @_revin_norm_kernel(%arg0: i32, %arg1: memref<1x16x8xf32, #tpu.memory_space<vmem>>, %arg2: memref<1x1x8xf32, #tpu.memory_space<vmem>>, %arg3: memref<1x1x8xf32, #tpu.memory_space<vmem>>, %arg4: memref<1x16x8xf32, #tpu.memory_space<vmem>>, %arg5: memref<1x1x8xf32, #tpu.memory_space<vmem>>, %arg6: memref<1x1x8xf32, #tpu.memory_space<vmem>>) attributes {dimension_semantics = [#tpu.dimension_semantics<parallel>], iteration_bounds = array<i64: 2>, scalar_prefetch = 0 : i64, scratch_operands = 0 : i64, tpu.core_type = #tpu.core_type<tc>, window_params = [{transform_indices = @transform_0, window_bounds = array<i64: 1, 16, 8>}, {pipeline_mode = #tpu.pipeline_mode<synchronous>, transform_indices = @transform_1, window_bounds = array<i64: 1, 1, 8>}, {pipeline_mode = #tpu.pipeline_mode<synchronous>, transform_indices = @transform_2, window_bounds = array<i64: 1, 1, 8>}, {transform_indices = @transform_3, window_bounds = array<i64: 1, 16, 8>}, {transform_indices = @transform_4, window_bounds = array<i64: 1, 1, 8>}, {transform_indices = @transform_5, window_bounds = array<i64: 1, 1, 8>}]} {
    %c0 = arith.constant 0 : index
    %c0_0 = arith.constant 0 : index
    %c0_1 = arith.constant 0 : index
    %0 = vector.load %arg1[%c0, %c0_0, %c0_1] : memref<1x16x8xf32, #tpu.memory_space<vmem>>, vector<1x16x8xf32>
    %cst = arith.constant dense<0.000000e+00> : vector<1x8xf32>
    %1 = vector.multi_reduction <add>, %0, %cst [1] : vector<1x16x8xf32> to vector<1x8xf32>
    %2 = vector.shape_cast %1 : vector<1x8xf32> to vector<1x1x8xf32>
    %cst_2 = arith.constant 1.600000e+01 : f32
    %3 = vector.broadcast %cst_2 : f32 to vector<1x1x8xf32>
    %4 = arith.divf %2, %3 : vector<1x1x8xf32>
    %5 = vector.broadcast %4 : vector<1x1x8xf32> to vector<1x16x8xf32>
    %6 = arith.subf %0, %5 : vector<1x16x8xf32>
    %7 = arith.mulf %6, %6 : vector<1x16x8xf32>
    %cst_3 = arith.constant dense<0.000000e+00> : vector<1x8xf32>
    %8 = vector.multi_reduction <add>, %7, %cst_3 [1] : vector<1x16x8xf32> to vector<1x8xf32>
    %9 = vector.shape_cast %8 : vector<1x8xf32> to vector<1x1x8xf32>
    %cst_4 = arith.constant 1.600000e+01 : f32
    %10 = vector.broadcast %cst_4 : f32 to vector<1x1x8xf32>
    %11 = arith.divf %9, %10 : vector<1x1x8xf32>
    %cst_5 = arith.constant 9.99999974E-6 : f32
    %12 = vector.broadcast %cst_5 : f32 to vector<1x1x8xf32>
    %13 = arith.addf %11, %12 : vector<1x1x8xf32>
    %14 = math.sqrt %13 : vector<1x1x8xf32>
    %cst_6 = arith.constant 9.99999974E-6 : f32
    %15 = vector.broadcast %cst_6 : f32 to vector<1x1x8xf32>
    %16 = arith.addf %11, %15 : vector<1x1x8xf32>
    %17 = math.rsqrt %16 : vector<1x1x8xf32>
    %c0_7 = arith.constant 0 : index
    %c0_8 = arith.constant 0 : index
    %c0_9 = arith.constant 0 : index
    %18 = vector.load %arg2[%c0_7, %c0_8, %c0_9] : memref<1x1x8xf32, #tpu.memory_space<vmem>>, vector<1x1x8xf32>
    %19 = arith.mulf %17, %18 : vector<1x1x8xf32>
    %c0_10 = arith.constant 0 : index
    %c0_11 = arith.constant 0 : index
    %c0_12 = arith.constant 0 : index
    %20 = vector.load %arg3[%c0_10, %c0_11, %c0_12] : memref<1x1x8xf32, #tpu.memory_space<vmem>>, vector<1x1x8xf32>
    %21 = arith.mulf %4, %19 : vector<1x1x8xf32>
    %22 = arith.subf %20, %21 : vector<1x1x8xf32>
    %23 = vector.broadcast %19 : vector<1x1x8xf32> to vector<1x16x8xf32>
    %24 = arith.mulf %0, %23 : vector<1x16x8xf32>
    %25 = vector.broadcast %22 : vector<1x1x8xf32> to vector<1x16x8xf32>
    %26 = arith.addf %24, %25 : vector<1x16x8xf32>
    %c0_13 = arith.constant 0 : index
    %c0_14 = arith.constant 0 : index
    %c0_15 = arith.constant 0 : index
    %27 = vector.load %arg4[%c0_13, %c0_14, %c0_15] : memref<1x16x8xf32, #tpu.memory_space<vmem>>, vector<1x16x8xf32>
    tpu.vector_store %arg4[%c0_13, %c0_14, %c0_15], %26 {strides = array<i32>} : memref<1x16x8xf32, #tpu.memory_space<vmem>>, vector<1x16x8xf32>,
    %c0_16 = arith.constant 0 : index
    %c0_17 = arith.constant 0 : index
    %c0_18 = arith.constant 0 : index
    %28 = vector.load %arg5[%c0_16, %c0_17, %c0_18] : memref<1x1x8xf32, #tpu.memory_space<vmem>>, vector<1x1x8xf32>
    tpu.vector_store %arg5[%c0_16, %c0_17, %c0_18], %4 {strides = array<i32>} : memref<1x1x8xf32, #tpu.memory_space<vmem>>, vector<1x1x8xf32>,
    %c0_19 = arith.constant 0 : index
    %c0_20 = arith.constant 0 : index
    %c0_21 = arith.constant 0 : index
    %29 = vector.load %arg6[%c0_19, %c0_20, %c0_21] : memref<1x1x8xf32, #tpu.memory_space<vmem>>, vector<1x1x8xf32>
    tpu.vector_store %arg6[%c0_19, %c0_20, %c0_21], %14 {strides = array<i32>} : memref<1x1x8xf32, #tpu.memory_space<vmem>>, vector<1x1x8xf32>,
    return
  }
  func.func @transform_0(%arg0: i32) -> (i32, i32, i32) {
    %c0_i32 = arith.constant 0 : i32
    %c0_i32_0 = arith.constant 0 : i32
    %c0_i32_1 = arith.constant 0 : i32
    return %arg0, %c0_i32, %c0_i32_0 : i32, i32, i32
  }
  func.func @transform_1(%arg0: i32) -> (i32, i32, i32) {
    %c0_i32 = arith.constant 0 : i32
    %c0_i32_0 = arith.constant 0 : i32
    %c0_i32_1 = arith.constant 0 : i32
    %c0_i32_2 = arith.constant 0 : i32
    return %c0_i32, %c0_i32_0, %c0_i32_1 : i32, i32, i32
  }
  func.func @transform_2(%arg0: i32) -> (i32, i32, i32) {
    %c0_i32 = arith.constant 0 : i32
    %c0_i32_0 = arith.constant 0 : i32
    %c0_i32_1 = arith.constant 0 : i32
    %c0_i32_2 = arith.constant 0 : i32
    return %c0_i32, %c0_i32_0, %c0_i32_1 : i32, i32, i32
  }
  func.func @transform_3(%arg0: i32) -> (i32, i32, i32) {
    %c0_i32 = arith.constant 0 : i32
    %c0_i32_0 = arith.constant 0 : i32
    %c0_i32_1 = arith.constant 0 : i32
    return %arg0, %c0_i32, %c0_i32_0 : i32, i32, i32
  }
  func.func @transform_4(%arg0: i32) -> (i32, i32, i32) {
    %c0_i32 = arith.constant 0 : i32
    %c0_i32_0 = arith.constant 0 : i32
    %c0_i32_1 = arith.constant 0 : i32
    return %arg0, %c0_i32, %c0_i32_0 : i32, i32, i32
  }
  func.func @transform_5(%arg0: i32) -> (i32, i32, i32) {
    %c0_i32 = arith.constant 0 : i32
    %c0_i32_0 = arith.constant 0 : i32
    %c0_i32_1 = arith.constant 0 : i32
    return %arg0, %c0_i32, %c0_i32_0 : i32, i32, i32
  }
}

</mosaic_0001>

<llo_original>
// kernel: tpu_custom_call.1
$region0: #{tpu_custom_call.1}
  #allocation0 [shape = 'u32[]', space=smem, size = 0x4, offset = 0x4, fixed_abs, tag = 'smem constant byte address 0x4 - core index']
  #allocation1 [shape = 'u32[72,128]{1,0:T(1,128)}', space=vmem, size = 0x9000, scoped, tag = 'internal scratch']
  %s0 = inlined_call_operand.vmem [shape: f32[2,16,8], index: 0, kind: input, shape index: {}]
  %s1 = inlined_call_operand.vmem [shape: f32[1,1,8], index: 1, kind: input, shape index: {}]
  %s2 = inlined_call_operand.vmem [shape: f32[1,1,8], index: 2, kind: input, shape index: {}]
  %s3 = inlined_call_operand.vmem [shape: f32[2,16,8], index: 3, kind: output, shape index: {0}]
  %s4 = inlined_call_operand.hbm [shape: f32[2,1,8], index: 4, kind: output, shape index: {1}]
  %s5 = inlined_call_operand.hbm [shape: f32[2,1,8], index: 5, kind: output, shape index: {2}]
  %6 = xla_tuple %s3, %s4, %s5
  %s7 = sld [smem:[#allocation0]]
  $region61: #{tpu_custom_call.1} parent=0
    _
  %s9 = ssub.s32 1, %s7
  %s10 = scalar_select 0, %s9, %s7
  $region1: #{tpu_custom_call.1} parent=0
    #allocation2 [shape = 'u8[1024]{0}', space=vmem, size = 0x400, scoped, tag = 'output window, operand 1']
    #allocation3 [shape = 's32[2]{0}', space=sflag, size = 0x8, scoped, tag = 'scoped memory for tpu_custom_call.1']
    #allocation4 [shape = 'u8[1024]{0}', space=vmem, size = 0x400, scoped, tag = 'output window, operand 2']
    #allocation5 [shape = 's32[2]{0}', space=sflag, size = 0x8, scoped, tag = 'scoped memory for tpu_custom_call.1']
    %11 = vsyncpa [#allocation3], 0
    %s12 = scalar_lea.sflag [#allocation3], 1
    %13 = vsyncpa %s12, 0
    %14 = vsyncpa [#allocation5], 0
    %s15 = scalar_lea.sflag [#allocation5], 1
    %16 = vsyncpa %s15, 0
    loop: start=0, step=1, limit=4
    $region2: #{tpu_custom_call.1} parent=1 // loop_pre_header
      _
    $region3: #{tpu_custom_call.1} parent=1 // loop_header
      %s18 = sphi 0, %s22
      %p19 = scmp.ge.s32.totalorder %s18, 4
      %s28 = sphi 0, %s30
      %s31 = sphi 0, %s28
      %s32 = sphi 0, %s31
      %s48 = sphi 0, %s32
      %s52 = sphi 0, %s52
      %s54 = sphi 0, %s52
      %s55 = sphi 0, %s54
      %s69 = sphi 0, %s55
      %s73 = sphi 0, %s73
      %s75 = sphi 0, %s73
      %s76 = sphi 0, %s75
      %s90 = sphi 0, %s76
      %s96 = sphi 0, %s98
      %s99 = sphi 0, %s96
      %s100 = sphi 0, %s99
      %s116 = sphi 0, %s100
      %s122 = sphi 0, %s124
      %s125 = sphi 0, %s122
      %s126 = sphi 0, %s125
      %s142 = sphi 0, %s126
      %s148 = sphi 0, %s150
      %s151 = sphi 0, %s148
      %s152 = sphi 0, %s151
      %s168 = sphi 0, %s152
    $region4: #{tpu_custom_call.1} parent=1 // loop_header_branch
      %21 = sbr.rel (%p19) target = $region8
    $region5: #{tpu_custom_call.1} parent=1 // loop_body
      %s23 = ssub.s32 %s18, 1
      %s24 = ssub.s32 %s18, 2
      %s25 = sadd.s32 %s18, 1
      %s26 = ssub.s32 %s18, %s25
      %p27 = scmp.eq.s32.totalorder %s26, 0
      %s29 = sadd.s32 %s28, 1
      %s30 = scalar_select %p27, %s28, %s29
      %p33 = pneg %p27
      %p34 = scmp.eq.s32.totalorder %s18, 1
      %p35 = por %p33, %p34
      %p36 = scmp.ne.s32.totalorder %s28, %s31
      %p37 = scmp.eq.s32.totalorder %s18, 0
      %p38 = por %p36, %p37
      %p39 = scmp.ne.s32.totalorder %s28, %s31
      %p40 = scmp.eq.s32.totalorder %s23, 1
      %p41 = por %p39, %p40
      %p42 = scmp.ne.s32.totalorder %s31, %s32
      %p43 = scmp.eq.s32.totalorder %s23, 0
      %p44 = por %p42, %p43
      %p45 = scmp.ne.s32.totalorder %s31, %s32
      %p46 = scmp.eq.s32.totalorder %s24, 1
      %p47 = por %p45, %p46
      %p49 = scmp.ne.s32.totalorder %s32, %s48
      %p50 = scmp.eq.s32.totalorder %s24, 0
      %p51 = por %p49, %p50
      %s53 = sadd.s32 %s52, 1
      %p56 = scmp.eq.s32.totalorder %s18, 1
      %p57 = scmp.ne.s32.totalorder %s52, %s54
      %p58 = scmp.eq.s32.totalorder %s18, 0
      %p59 = por %p57, %p58
      %p60 = scmp.ne.s32.totalorder %s52, %s54
      %p61 = scmp.eq.s32.totalorder %s23, 1
      %p62 = por %p60, %p61
      %p63 = scmp.ne.s32.totalorder %s54, %s55
      %p64 = scmp.eq.s32.totalorder %s23, 0
      %p65 = por %p63, %p64
      %p66 = scmp.ne.s32.totalorder %s54, %s55
      %p67 = scmp.eq.s32.totalorder %s24, 1
      %p68 = por %p66, %p67
      %p70 = scmp.ne.s32.totalorder %s55, %s69
      %p71 = scmp.eq.s32.totalorder %s24, 0
      %p72 = por %p70, %p71
      %s74 = sadd.s32 %s73, 1
      %p77 = scmp.eq.s32.totalorder %s18, 1
      %p78 = scmp.ne.s32.totalorder %s73, %s75
      %p79 = scmp.eq.s32.totalorder %s18, 0
      %p80 = por %p78, %p79
      %p81 = scmp.ne.s32.totalorder %s73, %s75
      %p82 = scmp.eq.s32.totalorder %s23, 1
      %p83 = por %p81, %p82
      %p84 = scmp.ne.s32.totalorder %s75, %s76
      %p85 = scmp.eq.s32.totalorder %s23, 0
      %p86 = por %p84, %p85
      %p87 = scmp.ne.s32.totalorder %s75, %s76
      %p88 = scmp.eq.s32.totalorder %s24, 1
      %p89 = por %p87, %p88
      %p91 = scmp.ne.s32.totalorder %s76, %s90
      %p92 = scmp.eq.s32.totalorder %s24, 0
      %p93 = por %p91, %p92
      %s94 = ssub.s32 %s18, %s25
      %p95 = scmp.eq.s32.totalorder %s94, 0
      %s97 = sadd.s32 %s96, 1
      %s98 = scalar_select %p95, %s96, %s97
      %p101 = pneg %p95
      %p102 = scmp.eq.s32.totalorder %s18, 1
      %p103 = por %p101, %p102
      %p104 = scmp.ne.s32.totalorder %s96, %s99
      %p105 = scmp.eq.s32.totalorder %s18, 0
      %p106 = por %p104, %p105
      %p107 = scmp.ne.s32.totalorder %s96, %s99
      %p108 = scmp.eq.s32.totalorder %s23, 1
      %p109 = por %p107, %p108
      %p110 = scmp.ne.s32.totalorder %s99, %s100
      %p111 = scmp.eq.s32.totalorder %s23, 0
      %p112 = por %p110, %p111
      %p113 = scmp.ne.s32.totalorder %s99, %s100
      %p114 = scmp.eq.s32.totalorder %s24, 1
      %p115 = por %p113, %p114
      %p117 = scmp.ne.s32.totalorder %s100, %s116
      %p118 = scmp.eq.s32.totalorder %s24, 0
      %p119 = por %p117, %p118
      %s120 = ssub.s32 %s18, %s25
      %p121 = scmp.eq.s32.totalorder %s120, 0
      %s123 = sadd.s32 %s122, 1
      %s124 = scalar_select %p121, %s122, %s123
      %p127 = pneg %p121
      %p128 = scmp.eq.s32.totalorder %s18, 1
      %p129 = por %p127, %p128
      %p130 = scmp.ne.s32.totalorder %s122, %s125
      %p131 = scmp.eq.s32.totalorder %s18, 0
      %p132 = por %p130, %p131
      %p133 = scmp.ne.s32.totalorder %s122, %s125
      %p134 = scmp.eq.s32.totalorder %s23, 1
      %p135 = por %p133, %p134
      %p136 = scmp.ne.s32.totalorder %s125, %s126
      %p137 = scmp.eq.s32.totalorder %s23, 0
      %p138 = por %p136, %p137
      %p139 = scmp.ne.s32.totalorder %s125, %s126
      %p140 = scmp.eq.s32.totalorder %s24, 1
      %p141 = por %p139, %p140
      %p143 = scmp.ne.s32.totalorder %s126, %s142
      %p144 = scmp.eq.s32.totalorder %s24, 0
      %p145 = por %p143, %p144
      %s146 = ssub.s32 %s18, %s25
      %p147 = scmp.eq.s32.totalorder %s146, 0
      %s149 = sadd.s32 %s148, 1
      %s150 = scalar_select %p147, %s148, %s149
      %p153 = pneg %p147
      %p154 = scmp.eq.s32.totalorder %s18, 1
      %p155 = por %p153, %p154
      %p156 = scmp.ne.s32.totalorder %s148, %s151
      %p157 = scmp.eq.s32.totalorder %s18, 0
      %p158 = por %p156, %p157
      %p159 = scmp.ne.s32.totalorder %s148, %s151
      %p160 = scmp.eq.s32.totalorder %s23, 1
      %p161 = por %p159, %p160
      %p162 = scmp.ne.s32.totalorder %s151, %s152
      %p163 = scmp.eq.s32.totalorder %s23, 0
      %p164 = por %p162, %p163
      %p165 = scmp.ne.s32.totalorder %s151, %s152
      %p166 = scmp.eq.s32.totalorder %s24, 1
      %p167 = por %p165, %p166
      %p169 = scmp.ne.s32.totalorder %s152, %s168
      %p170 = scmp.eq.s32.totalorder %s24, 0
      %p171 = por %p169, %p170
      %p172 = scmp.le.s32.totalorder 1, %s18
      %p173 = scmp.lt.s32.totalorder %s18, 3
      %p174 = pnand %p172, %p173
      %p175 = pneg %p174
      // Predicated region
      $region9: #{tpu_custom_call.1} parent=5 // pred_check
        _
      $region10: #{tpu_custom_call.1} parent=5 // pred_check_branch
        %177 = sbr.rel (%p174) target = $region12
      $region11: #{tpu_custom_call.1} parent=5 // pred_region
        %s178 = ssub.s32 %s18, 1
        // Predicated region
        $region13: #{tpu_custom_call.1} parent=11 // pred_check
          %p179 = pneg %p65
        $region14: #{tpu_custom_call.1} parent=11 // pred_check_branch
          %181 = sbr.rel (%p179) target = $region16
        $region15: #{tpu_custom_call.1} parent=11 // pred_region
          _
        $region16: #{tpu_custom_call.1} parent=11 // pred_fallthru
          _
        // Predicated region
        $region17: #{tpu_custom_call.1} parent=11 // pred_check
          %p182 = pneg %p86
        $region18: #{tpu_custom_call.1} parent=11 // pred_check_branch
          %184 = sbr.rel (%p182) target = $region20
        $region19: #{tpu_custom_call.1} parent=11 // pred_region
          _
        $region20: #{tpu_custom_call.1} parent=11 // pred_fallthru
          _
      $region12: #{tpu_custom_call.1} parent=5 // pred_fallthru
        _
      %p185 = scmp.lt.s32.totalorder %s18, 2
      // Predicated region
      $region21: #{tpu_custom_call.1} parent=5 // pred_check
        %p186 = pneg %p185
      $region22: #{tpu_custom_call.1} parent=5 // pred_check_branch
        %188 = sbr.rel (%p186) target = $region24
      $region23: #{tpu_custom_call.1} parent=5 // pred_region
        // Predicated region
        $region25: #{tpu_custom_call.1} parent=23 // pred_check
          %p189 = pneg %p38
        $region26: #{tpu_custom_call.1} parent=23 // pred_check_branch
          %191 = sbr.rel (%p189) target = $region28
        $region27: #{tpu_custom_call.1} parent=23 // pred_region
          %p192 = scmp.lt.s32.totalorder %s18, 1
          %s193 = scalar_select %p192, %s18, 1
          %s194 = smul.addr %s193, 2
          %s195 = smul.addr %s194, 8
          %s196 = scalar_lea.vmem %s0, %s195
        $region28: #{tpu_custom_call.1} parent=23 // pred_fallthru
          _
      $region24: #{tpu_custom_call.1} parent=5 // pred_fallthru
        _
      %p197 = scmp.le.s32.totalorder 1, %s18
      %p198 = scmp.lt.s32.totalorder %s18, 3
      %p199 = pnand %p197, %p198
      %p200 = pneg %p199
      // Predicated region
      $region29: #{tpu_custom_call.1} parent=5 // pred_check
        _
      $region30: #{tpu_custom_call.1} parent=5 // pred_check_branch
        %202 = sbr.rel (%p199) target = $region32
      $region31: #{tpu_custom_call.1} parent=5 // pred_region
        %s203 = ssub.s32 %s18, 1
        %p204 = scmp.lt.s32.totalorder %s23, 1
        %s205 = scalar_select %p204, %s23, 1
        %s206 = smul.addr %s205, 2
        %s207 = smul.addr %s206, 8
        %s208 = scalar_lea.vmem %s0, %s207
        %p209 = pneg %p44
        %p210 = pneg %p41
        %p211 = pneg %p65
        %p212 = pneg %p62
        %p213 = pneg %p86
        %p214 = pneg %p83
        %p215 = pneg %p112
        %p216 = pneg %p109
        %p217 = scmp.lt.s32.totalorder %s23, 1
        %s218 = scalar_select %p217, %s23, 1
        %s219 = smul.addr %s218, 2
        %s220 = smul.addr %s219, 8
        %s221 = scalar_lea.vmem %s3, %s220
        %p222 = pneg %p138
        %p223 = pneg %p135
        %s224 = sand.u32 %s125, 1
        %s225 = scalar_lea.sflag [#allocation3], %s224
        %s226 = sand.u32 %s125, 1
        %s227 = scalar_lea.vmem [#allocation2], %s226
        %p228 = pneg %p164
        %p229 = pneg %p161
        %s230 = sand.u32 %s151, 1
        %s231 = scalar_lea.sflag [#allocation5], %s230
        %s232 = sand.u32 %s151, 1
        %s233 = scalar_lea.vmem [#allocation4], %s232
        %p234 = scmp.lt.s32.totalorder %s23, 1
        %s235 = scalar_select %p234, %s23, 1
        %s236 = smul.addr %s235, 2
        %s237 = smul.addr %s236, 8
        %s238 = scalar_lea.vmem %s0, %s237
        %p239 = scmp.lt.s32.totalorder %s23, 1
        %s240 = scalar_select %p239, %s23, 1
        %s241 = smul.addr %s240, 2
        %s242 = smul.addr %s241, 8
        %s243 = scalar_lea.vmem %s3, %s242
        %v244 = vld [vmem:[%s238] sm:$0xff]
        %v245 = vld [vmem:[%s238 + $0x8] sm:$0xff]
        %vm246 = vcmask 64512
        %v247 = vsel %vm246, %v244, 0.0
        %v248 = vsel %vm246, %v245, 0.0
        %v249 = vadd.f32 %v247, %v248
        %v250 = vrot.slane %v249, 4
        %v251 = vadd.f32 %v249, %v250
        %v252 = vrot.slane %v251, 2
        %v253 = vadd.f32 %v251, %v252
        %v254 = vrot.slane %v253, 1
        %v255 = vadd.f32 %v253, %v254
        %v256 = vrcp.pop 16.0
        %v257 = vmul.f32 16.0, %v256
        %v258 = vsub.f32 1.0, %v257
        %v259 = vmul.f32 %v256, %v258
        %v260 = vadd.f32 %v256, %v259
        %vm261 = vweird.f32 %v256
        %v262 = vsel %vm261, %v256, %v260
        %v263 = vmul.f32 %v255, %v262
        %v264 = vsub.f32 %v244, %v263
        %v265 = vsub.f32 %v245, %v263
        %v266 = vmul.f32 %v264, %v264
        %v267 = vmul.f32 %v265, %v265
        %v268 = vsel %vm246, %v266, 0.0
        %v269 = vsel %vm246, %v267, 0.0
        %v270 = vadd.f32 %v268, %v269
        %v271 = vrot.slane %v270, 4
        %v272 = vadd.f32 %v270, %v271
        %v273 = vrot.slane %v272, 2
        %v274 = vadd.f32 %v272, %v273
        %v275 = vrot.slane %v274, 1
        %v276 = vadd.f32 %v274, %v275
        %v277 = vmul.f32 %v276, %v262
        %v278 = vadd.f32 %v277, 1e-05
        %v279 = vrsqrt.pop %v278
        %v280 = vmul.f32 %v279, %v278
        %v281 = vmul.f32 %v280, %v279
        %v282 = vmul.f32 0.5, %v281
        %v283 = vsub.f32 1.5, %v282
        %v284 = vmul.f32 %v279, %v283
        %v285 = vmul.f32 %v278, %v284
        %vm286 = vcmp.eq.f32.partialorder %v278, inf
        %v287 = vsel %vm286, %v278, %v285
        %vm288 = vcmp.eq.f32.partialorder %v278, 0.0
        %v289 = vand.u32 %v278, 2147483648
        %v290 = vsel %vm288, %v289, %v287
        %v291 = vrsqrt.pop %v278
        %v292 = vmul.f32 %v291, %v278
        %v293 = vmul.f32 %v292, %v291
        %v294 = vmul.f32 0.5, %v293
        %v295 = vsub.f32 1.5, %v294
        %v296 = vmul.f32 %v291, %v295
        %vm297 = vweird.f32 %v278
        %vm298 = vweird.f32 %v291
        %vm299 = vmor %vm297, %vm298
        %v300 = vsel %vm299, %v291, %v296
        %v301 = vld [vmem:[%s1] sm:$0x1]
        %v302 = vmul.f32 %v300, %v301
        %v303 = vld [vmem:[%s2] sm:$0x1]
        %v304 = vmul.f32 %v263, %v302
        %v305 = vsub.f32 %v303, %v304
        %v306 = vperm.slane %v302, 0
        %v307 = vmul.f32 %v244, %v306
        %v308 = vmul.f32 %v245, %v306
        %v310 = vperm.slane %v305, 0
        %v312 = vadd.f32 %v307, %v310
        %v313 = vadd.f32 %v308, %v310
        %314 = vst.msk [vmem:[%s243] sm:$0xff] %vm246, %v312
        %315 = vst.msk [vmem:[%s243 + $0x8] sm:$0xff] %vm246, %v313
        %vm316 = vcmask 57344
        %317 = vst.msk [vmem:[%s227] sm:$0x1] %vm316, %v263
        %318 = vst.msk [vmem:[%s233] sm:$0x1] %vm316, %v290
        %p319 = scmp.lt.s32.totalorder %s23, 1
        %s320 = scalar_select %p319, %s23, 1
        %s321 = smul.addr %s320, 2
        %s322 = smul.addr %s321, 8
        %s323 = scalar_lea.vmem %s3, %s322
        %s324 = sand.u32 %s125, 1
        %s325 = scalar_lea.sflag [#allocation3], %s324
        %s326 = sand.u32 %s125, 1
        %s327 = scalar_lea.vmem [#allocation2], %s326
        %s328 = sand.u32 %s151, 1
        %s329 = scalar_lea.sflag [#allocation5], %s328
        %s330 = sand.u32 %s151, 1
        %s331 = scalar_lea.vmem [#allocation4], %s330
        // Predicated region
        $region33: #{tpu_custom_call.1} parent=31 // pred_check
          %p332 = pneg %p109
        $region34: #{tpu_custom_call.1} parent=31 // pred_check_branch
          %334 = sbr.rel (%p332) target = $region36
        $region35: #{tpu_custom_call.1} parent=31 // pred_region
          _
        $region36: #{tpu_custom_call.1} parent=31 // pred_fallthru
          _
        // Predicated region
        $region37: #{tpu_custom_call.1} parent=31 // pred_check
          %p335 = pneg %p135
        $region38: #{tpu_custom_call.1} parent=31 // pred_check_branch
          %337 = sbr.rel (%p335) target = $region40
        $region39: #{tpu_custom_call.1} parent=31 // pred_region
          %339 = vsyncadd %s325, 0
          %s340 = scalar_lea.hbm %s4, %s23
          %s342 = sshll.u32 %s327, 4
          %s343 = int_to_ptr.vmem [resolvable:$true] %s342
          %s344 = sshll.u32 %s340, 4
          %s345 = int_to_ptr.hbm [resolvable:$true] %s344
          %347 = dma.vmem_to_hbm [thread:$0]  %s343, 16, %s345, %s325
        $region40: #{tpu_custom_call.1} parent=31 // pred_fallthru
          _
        // Predicated region
        $region41: #{tpu_custom_call.1} parent=31 // pred_check
          %p348 = pneg %p161
        $region42: #{tpu_custom_call.1} parent=31 // pred_check_branch
          %350 = sbr.rel (%p348) target = $region44
        $region43: #{tpu_custom_call.1} parent=31 // pred_region
          %352 = vsyncadd %s329, 0
          %s353 = scalar_lea.hbm %s5, %s23
          %s355 = sshll.u32 %s331, 4
          %s356 = int_to_ptr.vmem [resolvable:$true] %s355
          %s357 = sshll.u32 %s353, 4
          %s358 = int_to_ptr.hbm [resolvable:$true] %s357
          %360 = dma.vmem_to_hbm [thread:$0]  %s356, 16, %s358, %s329
        $region44: #{tpu_custom_call.1} parent=31 // pred_fallthru
          _
      $region32: #{tpu_custom_call.1} parent=5 // pred_fallthru
        _
      %p361 = scmp.le.s32.totalorder 2, %s18
      // Predicated region
      $region45: #{tpu_custom_call.1} parent=5 // pred_check
        %p362 = pneg %p361
      $region46: #{tpu_custom_call.1} parent=5 // pred_check_branch
        %364 = sbr.rel (%p362) target = $region48
      $region47: #{tpu_custom_call.1} parent=5 // pred_region
        %s365 = ssub.s32 %s18, 2
        // Predicated region
        $region49: #{tpu_custom_call.1} parent=47 // pred_check
          %p366 = pneg %p115
        $region50: #{tpu_custom_call.1} parent=47 // pred_check_branch
          %368 = sbr.rel (%p366) target = $region52
        $region51: #{tpu_custom_call.1} parent=47 // pred_region
          %p369 = scmp.lt.s32.totalorder %s24, 1
          %s370 = scalar_select %p369, %s24, 1
          %s371 = smul.addr %s370, 2
          %s372 = smul.addr %s371, 8
          %s373 = scalar_lea.vmem %s3, %s372
        $region52: #{tpu_custom_call.1} parent=47 // pred_fallthru
          _
        // Predicated region
        $region53: #{tpu_custom_call.1} parent=47 // pred_check
          %p374 = pneg %p141
        $region54: #{tpu_custom_call.1} parent=47 // pred_check_branch
          %376 = sbr.rel (%p374) target = $region56
        $region55: #{tpu_custom_call.1} parent=47 // pred_region
          %s377 = sand.u32 %s126, 1
          %s378 = scalar_lea.sflag [#allocation3], %s377
          %s379 = sand.u32 %s126, 1
          %s380 = scalar_lea.vmem [#allocation2], %s379
          %382 = dma.done %s378, 16
        $region56: #{tpu_custom_call.1} parent=47 // pred_fallthru
          _
        // Predicated region
        $region57: #{tpu_custom_call.1} parent=47 // pred_check
          %p383 = pneg %p167
        $region58: #{tpu_custom_call.1} parent=47 // pred_check_branch
          %385 = sbr.rel (%p383) target = $region60
        $region59: #{tpu_custom_call.1} parent=47 // pred_region
          %s386 = sand.u32 %s152, 1
          %s387 = scalar_lea.sflag [#allocation5], %s386
          %s388 = sand.u32 %s152, 1
          %s389 = scalar_lea.vmem [#allocation4], %s388
          %391 = dma.done %s387, 16
        $region60: #{tpu_custom_call.1} parent=47 // pred_fallthru
          _
      $region48: #{tpu_custom_call.1} parent=5 // pred_fallthru
        _
    $region6: #{tpu_custom_call.1} parent=1 // loop_footer
      %s22 = sadd.s32 1, %s18
    $region7: #{tpu_custom_call.1} parent=1 // loop_footer_branch
      %17 = sbr.rel target = $region3
    $region8: #{tpu_custom_call.1} parent=1 // loop_exit
      _
    %392 = vsyncpa [#allocation3], 1
    %s393 = scalar_lea.sflag [#allocation3], 1
    %394 = vsyncpa %s393, 1
    %395 = vsyncpa [#allocation5], 1
    %s396 = scalar_lea.sflag [#allocation5], 1
    %397 = vsyncpa %s396, 1

</llo_original>
